<compile_context>
chip_gen: v6e
topology: v6e:2x2x1
jax: 0.10.0
libtpu: 0.0.40
codegen_flags: <defaults>
</compile_context>

<pallas_src>
import jax
import jax.numpy as jnp
from jax.experimental import pallas as pl
from jax.experimental.pallas import tpu as pltpu


def _pos_embed_add_kernel(x_ref, p_ref, o_ref):
    # x_ref: (tb, tl), p_ref: (1, tl) broadcast over the tb rows, o_ref: (tb, tl).
    # Add in the promoted dtype (PyTorch `x += p` semantics), write in x.dtype.
    o_ref[...] = (x_ref[...] + p_ref[...]).astype(o_ref.dtype)


def _round_up(v, m):
    return ((v + m - 1) // m) * m


def _largest_dividing_tile(total, max_tile, quantum):
    """Largest t <= max_tile with t % quantum == 0 and total % t == 0, or None."""
    t = (max_tile // quantum) * quantum
    while t >= quantum:
        if total % t == 0:
            return t
        t -= quantum
    return None


def positional_embedding_forward(x, position_embedding):
    """
    x:                  (B, S, E)   with S = num_patches + 1
    position_embedding: (1, S, E)   learnable parameter, broadcast over batch
    returns x + position_embedding  (same shape and dtype as x)
    """
    B, S, E = x.shape
    assert position_embedding.shape == (1, S, E), position_embedding.shape

    # Flatten (S, E) into one lane-dense axis (contiguous reshape => free for
    # default row-major layouts; non-standard layouts would force an XLA copy).
    L = S * E
    x2 = x.reshape(B, L)
    p2 = position_embedding.reshape(1, L)  # keep parameter dtype; promote in-kernel

    x_isz = jnp.dtype(x.dtype).itemsize
    p_isz = jnp.dtype(position_embedding.dtype).itemsize

    # ---- tile sizes -------------------------------------------------------
    # Batch (sublane) tile: full B when small, else 64 (multiple of 8).
    tb = B if B <= 64 else 64
    tb_pad = max(8, _round_up(tb, 8))  # VMEM pads the sublane dim to 8

    # Lane tile: sized from a ~8 MiB per-step VMEM budget counting the
    # double-buffered x block, out block and (sublane-padded) pos block.
    # Double-buffered total ~16 MiB -> fits the explicit 32 MiB scoped limit on
    # every generation (v5e/v6e/v7x).
    step_budget_bytes = 8 * 1024 * 1024
    per_lane_bytes = 2 * tb_pad * x_isz + 8 * p_isz
    tl_cap = max(128, (step_budget_bytes // per_lane_bytes) // 128 * 128)

    if L <= tl_cap:
        tl = L
    else:
        div_tl = _largest_dividing_tile(L, tl_cap, 128)
        # Prefer an evenly dividing lane tile (no partial trailing block) when a
        # reasonably large one exists; otherwise accept one partial trailer.
        tl = div_tl if (div_tl is not None and div_tl >= tl_cap // 2) else tl_cap

    # v7x has 2 TensorCores: avoid a degenerate (1, 1) grid when an axis can be
    # split without violating the (8, 128) block constraints.
    if pl.cdiv(B, tb) * pl.cdiv(L, tl) == 1:
        if L >= 256 and L % 256 == 0:
            tl = L // 2                              # still a multiple of 128
        elif B >= 16:
            tb = max(8, ((B // 2) // 8) * 8)         # still a multiple of 8

    n_lane = pl.cdiv(L, tl)
    n_batch = pl.cdiv(B, tb)

    out = pl.pallas_call(
        _pos_embed_add_kernel,
        out_shape=jax.ShapeDtypeStruct((B, L), x.dtype),
        # Batch-tile axis innermost: the pos-embed block index (0, j) is constant
        # across consecutive steps, so its DMA is not re-issued every iteration.
        grid=(n_lane, n_batch),
        in_specs=[
            pl.BlockSpec((tb, tl), lambda j, i: (i, j)),   # x row-block
            pl.BlockSpec((1, tl), lambda j, i: (0, j)),    # pos embed, resident over batch
        ],
        out_specs=pl.BlockSpec((tb, tl), lambda j, i: (i, j)),
        # Mirror PyTorch's in-place `x +=`: alias x2 to the output buffer.
        input_output_aliases={0: 0},
        compiler_params=pltpu.CompilerParams(
            dimension_semantics=("parallel", "parallel"),
            vmem_limit_bytes=32 * 1024 * 1024,
        ),
    )(x2, p2)

    return out.reshape(B, S, E)


if __name__ == "__main__":
    # Shapes implied by the module: PositionalEmbedding(num_patches=16, embed_dim=32)
    # applied to a batch of 2 sequences of length num_patches + 1 = 17.
    B = 2
    num_patches = 16
    embed_dim = 32
    S = num_patches + 1

    key = jax.random.PRNGKey(0)
    kx, kp = jax.random.split(key)

    x = jax.random.normal(kx, (B, S, embed_dim), dtype=jnp.float32)
    # nn.Parameter(torch.zeros(...)) is all-zero at init; use deterministic
    # random values so the numerical check is meaningful (it's learnable).
    position_embedding = (
        jax.random.normal(kp, (1, S, embed_dim), dtype=jnp.float32) * 0.02
    )

    # Pure-JAX reference of the broadcast add (computed before the kernel call).
    ref = x + position_embedding

    out = jax.jit(positional_embedding_forward)(x, position_embedding)
    out = jax.block_until_ready(out)

    assert out.shape == (B, S, embed_dim), out.shape
    assert out.dtype == x.dtype, out.dtype
    assert jnp.allclose(out, ref, atol=1e-6, rtol=1e-6)

    print("KERNEL_OK")
</pallas_src>

<mosaic_0001>
module attributes {stable_mosaic.version = 11 : i64} {
  func.func @_pos_embed_add_kernel(%arg0: i32, %arg1: i32, %arg2: memref<2x544xf32, #tpu.memory_space<vmem>>, %arg3: memref<1x544xf32, #tpu.memory_space<vmem>>, %arg4: memref<2x544xf32, #tpu.memory_space<vmem>>) attributes {dimension_semantics = [#tpu.dimension_semantics<parallel>, #tpu.dimension_semantics<parallel>], iteration_bounds = array<i64: 1, 1>, scalar_prefetch = 0 : i64, scratch_operands = 0 : i64, tpu.core_type = #tpu.core_type<tc>, window_params = [{transform_indices = @transform_0, window_bounds = array<i64: 2, 544>}, {transform_indices = @transform_1, window_bounds = array<i64: 1, 544>}, {transform_indices = @transform_2, window_bounds = array<i64: 2, 544>}]} {
    %c0 = arith.constant 0 : index
    %c0_0 = arith.constant 0 : index
    %0 = vector.load %arg2[%c0, %c0_0] : memref<2x544xf32, #tpu.memory_space<vmem>>, vector<2x544xf32>
    %c0_1 = arith.constant 0 : index
    %c0_2 = arith.constant 0 : index
    %1 = vector.load %arg3[%c0_1, %c0_2] : memref<1x544xf32, #tpu.memory_space<vmem>>, vector<1x544xf32>
    %2 = vector.broadcast %1 : vector<1x544xf32> to vector<2x544xf32>
    %3 = arith.addf %0, %2 : vector<2x544xf32>
    %c0_3 = arith.constant 0 : index
    %c0_4 = arith.constant 0 : index
    %4 = vector.load %arg4[%c0_3, %c0_4] : memref<2x544xf32, #tpu.memory_space<vmem>>, vector<2x544xf32>
    tpu.vector_store %arg4[%c0_3, %c0_4], %3 {strides = array<i32>} : memref<2x544xf32, #tpu.memory_space<vmem>>, vector<2x544xf32>,
    return
  }
  func.func @transform_0(%arg0: i32, %arg1: i32) -> (i32, i32) {
    %c0_i32 = arith.constant 0 : i32
    return %arg1, %arg0 : i32, i32
  }
  func.func @transform_1(%arg0: i32, %arg1: i32) -> (i32, i32) {
    %c0_i32 = arith.constant 0 : i32
    %c0_i32_0 = arith.constant 0 : i32
    return %c0_i32, %arg0 : i32, i32
  }
  func.func @transform_2(%arg0: i32, %arg1: i32) -> (i32, i32) {
    %c0_i32 = arith.constant 0 : i32
    return %arg1, %arg0 : i32, i32
  }
}

</mosaic_0001>

<llo_original>
// kernel: positional_embedding_forward.1
$region0: #{positional_embedding_forward.1}
  #allocation0 [shape = 'u32[]', space=smem, size = 0x4, offset = 0x4, fixed_abs, tag = 'smem constant byte address 0x4 - core index']
  #allocation1 [shape = 'u32[144,128]{1,0:T(1,128)}', space=vmem, size = 0x12000, scoped, tag = 'internal scratch']
  %s0 = inlined_call_operand.vmem [shape: f32[2,544], index: 0, kind: input, shape index: {}, may-alias: {0,2}]
  %s1 = inlined_call_operand.vmem [shape: f32[1,544], index: 1, kind: input, shape index: {}]
  %s2 = inlined_call_operand.vmem [shape: f32[2,544], index: 2, kind: output, shape index: {}, may-alias: {0,2}]
  %s3 = sld [smem:[#allocation0]]
  $region18: #{positional_embedding_forward.1} parent=0
    _
  %s5 = ssub.s32 1, %s3
  %s6 = scalar_select 0, %s5, %s3
  // Predicated region
  $region2: #{positional_embedding_forward.1} parent=0 // pred_check
    _
  $region3: #{positional_embedding_forward.1} parent=0 // pred_check_branch
    %8 = sbr.rel (0) target = $region5
  $region4: #{positional_embedding_forward.1} parent=0 // pred_region
    _
  $region5: #{positional_embedding_forward.1} parent=0 // pred_fallthru
    _
  // Predicated region
  $region6: #{positional_embedding_forward.1} parent=0 // pred_check
    _
  $region7: #{positional_embedding_forward.1} parent=0 // pred_check_branch
    %10 = sbr.rel (0) target = $region9
  $region8: #{positional_embedding_forward.1} parent=0 // pred_region
    _
  $region9: #{positional_embedding_forward.1} parent=0 // pred_fallthru
    _
  %v11 = vld [vmem:[%s0] sm:$0xff]
  %v12 = vld [vmem:[%s0 + $0x8] sm:$0x3]
  %v13 = vld [vmem:[%s1] sm:$0x1f]
  %v15 = vlaneseq
  %v16 = vshrl.u32 %v15, 7
  %v17 = vsub.s32 0, %v16
  %v18 = vrot.slane %v13, %v17
  %v19 = vlaneseq
  %v20 = vshrl.u32 %v19, 7
  %v21 = vsub.s32 1, %v20
  %v22 = vrot.slane %v13, %v21
  %v23 = vlaneseq
  %v24 = vshrl.u32 %v23, 7
  %v25 = vsub.s32 2, %v24
  %v26 = vrot.slane %v13, %v25
  %v27 = vlaneseq
  %v28 = vshrl.u32 %v27, 7
  %v29 = vsub.s32 3, %v28
  %v30 = vrot.slane %v13, %v29
  %v31 = vlaneseq
  %v32 = vshrl.u32 %v31, 7
  %v33 = vsub.s32 4, %v32
  %v34 = vrot.slane %v13, %v33
  %v35 = vcombine.low %v18, %v22
  %v36 = vcombine.low %v26, %v30
  %v38 = vunpack.c.l.s4 1983009808
  %v39 = vunpack.c.0.s8 %v38
  %v40 = vlaneseq
  %v41 = vshrl.u32 %v40, 7
  %v42 = vsub.s32 %v39, %v41
  %v43 = vrot.slane %v35, %v42
  %v45 = vunpack.c.l.s4 1983009808
  %v46 = vunpack.c.0.s8 %v45
  %v47 = vlaneseq
  %v48 = vshrl.u32 %v47, 7
  %v49 = vsub.s32 %v46, %v48
  %v50 = vrot.slane %v36, %v49
  %v51 = vcombine.low %v43, %v50
  %v53 = vunpack.c.l.s4 1983009808
  %v54 = vunpack.c.0.s8 %v53
  %v55 = vlaneseq
  %v56 = vshrl.u32 %v55, 7
  %v57 = vsub.s32 %v54, %v56
  %v58 = vrot.slane %v34, %v57
  %v61 = vadd.f32 %v11, %v51
  %v62 = vadd.f32 %v12, %v58
  %63 = vst [vmem:[%s2] sm:$0xff] %v61
  %vm64 = vcmask 254976
  %65 = vst.msk [vmem:[%s2 + $0x8] sm:$0x3] %vm64, %v62
  // Predicated region
  $region10: #{positional_embedding_forward.1} parent=0 // pred_check
    _
  $region11: #{positional_embedding_forward.1} parent=0 // pred_check_branch
    %67 = sbr.rel (0) target = $region13
  $region12: #{positional_embedding_forward.1} parent=0 // pred_region
    _
  $region13: #{positional_embedding_forward.1} parent=0 // pred_fallthru
    _
  // Predicated region
  $region14: #{positional_embedding_forward.1} parent=0 // pred_check
    _
  $region15: #{positional_embedding_forward.1} parent=0 // pred_check_branch
    %69 = sbr.rel (0) target = $region17
  $region16: #{positional_embedding_forward.1} parent=0 // pred_region
    _
  $region17: #{positional_embedding_forward.1} parent=0 // pred_fallthru
    _

</llo_original>
